<compile_context>
chip_gen: v6e
topology: v6e:2x2x1
jax: 0.10.0
libtpu: 0.0.40
codegen_flags: <defaults>
</compile_context>

<pallas_src>
import functools
import math

import jax
import jax.numpy as jnp
from jax.experimental import pallas as pl
from jax.experimental.pallas import tpu as pltpu


def layernorm_kernel(x_ref, wb_ref, o_ref, *, eps, inv_h):
    x = x_ref[...].astype(jnp.float32)                       # (tm, H)
    mean = jnp.sum(x, axis=-1, keepdims=True) * inv_h        # (tm, 1)
    d = x - mean                                             # reused for output
    var = jnp.sum(d * d, axis=-1, keepdims=True) * inv_h     # biased, two-pass
    inv = jax.lax.rsqrt(var + eps)                           # EUP
    w = wb_ref[0:1, :]                                       # (1, H), f32
    b = wb_ref[1:2, :]                                       # (1, H), f32
    o_ref[...] = (d * inv * w + b).astype(o_ref.dtype)


def _vmem_limit_bytes():
    """3/4 of physical VMEM: 96 MiB on v5e/v6e (128 MiB), 48 MiB on v7x (64 MiB)."""
    try:
        cap = int(pltpu.get_tpu_info().vmem_capacity_bytes)
    except Exception:
        cap = 64 * 1024 * 1024   # conservative: v7x per-TensorCore capacity
    return (cap * 3) // 4


def layer_norm(x, weight, bias, eps=1e-12, *, block_rows=None,
               core_parallel_rows=False):
    orig_shape = x.shape
    hidden = orig_shape[-1]
    rows = math.prod(orig_shape[:-1]) if len(orig_shape) > 1 else 1
    x2 = x.reshape(rows, hidden)

    vmem_limit = _vmem_limit_bytes()
    itemsize = jnp.dtype(x.dtype).itemsize
    if block_rows is None:
        # Per-row VMEM cost: 2x buffered input + 2x buffered output (x.dtype)
        # plus ~3 tile-sized f32 temporaries inside the kernel.
        bytes_per_row = hidden * (4 * itemsize + 3 * 4)
        budget = vmem_limit // 2                # 50% headroom for wb + scratch
        br = budget // max(1, bytes_per_row)
        br = max(8, min(4096, int(br)))         # raised cap (was 1024)
    else:
        br = int(block_rows)
    br = ((br + 7) // 8) * 8                    # sublane multiple
    rows_rounded = ((rows + 7) // 8) * 8
    br = min(br, rows_rounded)                  # don't over-allocate tiny inputs

    # Pack weight & bias into one f32 (2, H) array: single resident operand,
    # no per-tile casts inside the kernel.
    wb = jnp.stack(
        [weight.astype(jnp.float32).reshape(hidden),
         bias.astype(jnp.float32).reshape(hidden)],
        axis=0,
    )

    grid = (pl.cdiv(rows, br),)
    row_semantics = pltpu.CORE_PARALLEL if core_parallel_rows else pltpu.PARALLEL
    kernel = functools.partial(layernorm_kernel, eps=float(eps),
                               inv_h=1.0 / float(hidden))

    out = pl.pallas_call(
        kernel,
        out_shape=jax.ShapeDtypeStruct((rows, hidden), x.dtype),
        grid_spec=pltpu.PrefetchScalarGridSpec(
            num_scalar_prefetch=0,
            grid=grid,
            in_specs=[
                pl.BlockSpec((br, hidden), lambda i: (i, 0)),
                pl.BlockSpec((2, hidden), lambda i: (0, 0)),
            ],
            out_specs=pl.BlockSpec((br, hidden), lambda i: (i, 0)),
        ),
        compiler_params=pltpu.CompilerParams(
            dimension_semantics=(row_semantics,),
            vmem_limit_bytes=int(vmem_limit),
        ),
    )(x2, wb)

    return out.reshape(orig_shape)


def _reference(x, weight, bias, eps):
    u = jnp.mean(x, axis=-1, keepdims=True)
    s = jnp.mean((x - u) ** 2, axis=-1, keepdims=True)
    return weight * ((x - u) / jnp.sqrt(s + eps)) + bias


if __name__ == "__main__":
    root = jax.random.PRNGKey(0)
    k1, k2, k3, k4 = jax.random.split(root, 4)
    eps = 1e-12

    # Case 1: small spec-consistent shape (batch=2, seq=8, hidden=32),
    # weight=ones / bias=zeros matching the PyTorch module's init.
    batch, seq, hidden = 2, 8, 32
    x = jax.random.normal(k1, (batch, seq, hidden), dtype=jnp.float32)
    weight = jnp.ones((hidden,), dtype=jnp.float32)
    bias = jnp.zeros((hidden,), dtype=jnp.float32)
    y = jax.block_until_ready(layer_norm(x, weight, bias, eps))
    y_ref = _reference(x, weight, bias, eps)
    assert jnp.allclose(y, y_ref, atol=1e-5, rtol=1e-5), "case 1 mismatch"

    # Case 2: lane-dense hidden, ragged row count (15 rows -> masked partial
    # block), non-trivial affine params, and a mean offset to exercise the
    # two-pass variance numerics.
    b2, s2_, h2 = 3, 5, 128
    x2 = 5.0 + jax.random.normal(k2, (b2, s2_, h2), dtype=jnp.float32)
    w2 = 1.0 + 0.1 * jax.random.normal(k3, (h2,), dtype=jnp.float32)
    bb2 = 0.1 * jax.random.normal(k4, (h2,), dtype=jnp.float32)
    y2 = jax.block_until_ready(layer_norm(x2, w2, bb2, eps))
    y2_ref = _reference(x2, w2, bb2, eps)
    assert jnp.allclose(y2, y2_ref, atol=1e-5, rtol=1e-5), "case 2 mismatch"

    print("KERNEL_OK")
</pallas_src>

<mosaic_0001>
module attributes {stable_mosaic.version = 11 : i64} {
  func.func @layernorm_kernel(%arg0: i32, %arg1: memref<16x32xf32, #tpu.memory_space<vmem>>, %arg2: memref<2x32xf32, #tpu.memory_space<vmem>>, %arg3: memref<16x32xf32, #tpu.memory_space<vmem>>) attributes {dimension_semantics = [#tpu.dimension_semantics<parallel>], iteration_bounds = array<i64: 1>, scalar_prefetch = 0 : i64, scratch_operands = 0 : i64, tpu.core_type = #tpu.core_type<tc>, window_params = [{transform_indices = @transform_0, window_bounds = array<i64: 16, 32>}, {pipeline_mode = #tpu.pipeline_mode<synchronous>, transform_indices = @transform_1, window_bounds = array<i64: 2, 32>}, {transform_indices = @transform_2, window_bounds = array<i64: 16, 32>}]} {
    %c0 = arith.constant 0 : index
    %c0_0 = arith.constant 0 : index
    %0 = vector.load %arg1[%c0, %c0_0] : memref<16x32xf32, #tpu.memory_space<vmem>>, vector<16x32xf32>
    %cst = arith.constant dense<0.000000e+00> : vector<16xf32>
    %1 = vector.multi_reduction <add>, %0, %cst [1] : vector<16x32xf32> to vector<16xf32>
    %2 = vector.shape_cast %1 : vector<16xf32> to vector<16x1xf32>
    %cst_1 = arith.constant 3.125000e-02 : f32
    %3 = vector.broadcast %cst_1 : f32 to vector<16x1xf32>
    %4 = arith.mulf %2, %3 : vector<16x1xf32>
    %5 = vector.broadcast %4 : vector<16x1xf32> to vector<16x32xf32>
    %6 = arith.subf %0, %5 : vector<16x32xf32>
    %7 = arith.mulf %6, %6 : vector<16x32xf32>
    %cst_2 = arith.constant dense<0.000000e+00> : vector<16xf32>
    %8 = vector.multi_reduction <add>, %7, %cst_2 [1] : vector<16x32xf32> to vector<16xf32>
    %9 = vector.shape_cast %8 : vector<16xf32> to vector<16x1xf32>
    %cst_3 = arith.constant 3.125000e-02 : f32
    %10 = vector.broadcast %cst_3 : f32 to vector<16x1xf32>
    %11 = arith.mulf %9, %10 : vector<16x1xf32>
    %cst_4 = arith.constant 9.99999996E-13 : f32
    %12 = vector.broadcast %cst_4 : f32 to vector<16x1xf32>
    %13 = arith.addf %11, %12 : vector<16x1xf32>
    %14 = math.rsqrt %13 : vector<16x1xf32>
    %c0_5 = arith.constant 0 : index
    %c0_6 = arith.constant 0 : index
    %15 = vector.load %arg2[%c0_5, %c0_6] : memref<2x32xf32, #tpu.memory_space<vmem>>, vector<1x32xf32>
    %c1 = arith.constant 1 : index
    %c0_7 = arith.constant 0 : index
    %16 = vector.load %arg2[%c1, %c0_7] : memref<2x32xf32, #tpu.memory_space<vmem>>, vector<1x32xf32>
    %17 = vector.broadcast %14 : vector<16x1xf32> to vector<16x32xf32>
    %18 = arith.mulf %6, %17 : vector<16x32xf32>
    %19 = vector.broadcast %15 : vector<1x32xf32> to vector<16x32xf32>
    %20 = arith.mulf %18, %19 : vector<16x32xf32>
    %21 = vector.broadcast %16 : vector<1x32xf32> to vector<16x32xf32>
    %22 = arith.addf %20, %21 : vector<16x32xf32>
    %c0_8 = arith.constant 0 : index
    %c0_9 = arith.constant 0 : index
    %23 = vector.load %arg3[%c0_8, %c0_9] : memref<16x32xf32, #tpu.memory_space<vmem>>, vector<16x32xf32>
    tpu.vector_store %arg3[%c0_8, %c0_9], %22 {strides = array<i32>} : memref<16x32xf32, #tpu.memory_space<vmem>>, vector<16x32xf32>,
    return
  }
  func.func @transform_0(%arg0: i32) -> (i32, i32) {
    %c0_i32 = arith.constant 0 : i32
    %c0_i32_0 = arith.constant 0 : i32
    return %arg0, %c0_i32 : i32, i32
  }
  func.func @transform_1(%arg0: i32) -> (i32, i32) {
    %c0_i32 = arith.constant 0 : i32
    %c0_i32_0 = arith.constant 0 : i32
    %c0_i32_1 = arith.constant 0 : i32
    return %c0_i32, %c0_i32_0 : i32, i32
  }
  func.func @transform_2(%arg0: i32) -> (i32, i32) {
    %c0_i32 = arith.constant 0 : i32
    %c0_i32_0 = arith.constant 0 : i32
    return %arg0, %c0_i32 : i32, i32
  }
}

</mosaic_0001>

<llo_original>
// kernel: tpu_custom_call.1
$region0: #{tpu_custom_call.1}
  #allocation0 [shape = 'u32[]', space=smem, size = 0x4, offset = 0x4, fixed_abs, tag = 'smem constant byte address 0x4 - core index']
  #allocation1 [shape = 'u32[144,128]{1,0:T(1,128)}', space=vmem, size = 0x12000, scoped, tag = 'internal scratch']
  %s0 = inlined_call_operand.hbm [shape: f32[16,32], index: 0, kind: input, shape index: {}]
  %s1 = inlined_call_operand.hbm [shape: f32[2,32], index: 1, kind: input, shape index: {}]
  %s2 = inlined_call_operand.hbm [shape: f32[16,32], index: 2, kind: output, shape index: {}]
  %s3 = sld [smem:[#allocation0]]
  $region26: #{tpu_custom_call.1} parent=0
    _
  %s5 = ssub.s32 1, %s3
  %s6 = scalar_select 0, %s5, %s3
  $region1: #{tpu_custom_call.1} parent=0
    #allocation2 [shape = 'u8[8192]{0}', space=vmem, size = 0x2000, scoped, tag = 'input window, operand 0, single buffered']
    #allocation3 [shape = 's32[1]{0}', space=sflag, size = 0x4, scoped, tag = 'scoped memory for tpu_custom_call.1']
    #allocation4 [shape = 's32[1]{0}', space=sflag, size = 0x4, scoped, tag = 'scoped memory for tpu_custom_call.1']
    #allocation5 [shape = 'u8[1024]{0}', space=vmem, size = 0x400, scoped, tag = 'input window, operand 1, single buffered']
    #allocation6 [shape = 's32[1]{0}', space=sflag, size = 0x4, scoped, tag = 'scoped memory for tpu_custom_call.1']
    #allocation7 [shape = 'u8[8192]{0}', space=vmem, size = 0x2000, scoped, tag = 'output window, operand 0, single buffered']
    %7 = vsyncpa [#allocation3], 0
    %8 = vsyncpa [#allocation6], 0
    %9 = vsyncpa [#allocation4], 0
    // Predicated region
    $region2: #{tpu_custom_call.1} parent=1 // pred_check
      _
    $region3: #{tpu_custom_call.1} parent=1 // pred_check_branch
      %11 = sbr.rel (0) target = $region5
    $region4: #{tpu_custom_call.1} parent=1 // pred_region
      %s13 = ssub.s32 256, 256
      %14 = vsyncadd [#allocation3], %s13
      %s15 = sshll.u32 [#allocation2], 4
      %s16 = int_to_ptr.vmem [resolvable:$true] %s15
      %21 = dma.hbm_to_vmem [thread:$0]  %s0, 256, %s16, [#allocation3], 128, 128, 8
    $region5: #{tpu_custom_call.1} parent=1 // pred_fallthru
      _
    // Predicated region
    $region6: #{tpu_custom_call.1} parent=1 // pred_check
      _
    $region7: #{tpu_custom_call.1} parent=1 // pred_check_branch
      %23 = sbr.rel (0) target = $region9
    $region8: #{tpu_custom_call.1} parent=1 // pred_region
      %s25 = ssub.s32 32, 32
      %26 = vsyncadd [#allocation6], %s25
      %s28 = sshll.u32 [#allocation5], 4
      %s29 = int_to_ptr.vmem [resolvable:$true] %s28
      %31 = dma.hbm_to_vmem [thread:$0]  %s1, 32, %s29, [#allocation6]
    $region9: #{tpu_custom_call.1} parent=1 // pred_fallthru
      _
    // Predicated region
    $region10: #{tpu_custom_call.1} parent=1 // pred_check
      _
    $region11: #{tpu_custom_call.1} parent=1 // pred_check_branch
      %33 = sbr.rel (0) target = $region13
    $region12: #{tpu_custom_call.1} parent=1 // pred_region
      %34 = dma.done [#allocation3], 256
    $region13: #{tpu_custom_call.1} parent=1 // pred_fallthru
      _
    // Predicated region
    $region14: #{tpu_custom_call.1} parent=1 // pred_check
      _
    $region15: #{tpu_custom_call.1} parent=1 // pred_check_branch
      %36 = sbr.rel (0) target = $region17
    $region16: #{tpu_custom_call.1} parent=1 // pred_region
      %37 = dma.done [#allocation6], 32
    $region17: #{tpu_custom_call.1} parent=1 // pred_fallthru
      _
    %v38 = vld [vmem:[#allocation2] sm:$0xff]
    %v39 = vld [vmem:[#allocation2 + $0x8] sm:$0xff]
    %vm40 = vcmask 261120
    %v41 = vsel %vm40, %v38, 0.0
    %42 = vadd.xlane.f32.xlu0 %v41
    %v43 = vpop.xlane.xlu0 %42
    %v44 = vsel %vm40, %v39, 0.0
    %45 = vadd.xlane.f32.xlu0 %v44
    %v46 = vpop.xlane.xlu0 %45
    %v47 = vmul.f32 %v43, 0.03125
    %v48 = vmul.f32 %v46, 0.03125
    %v49 = vsub.f32 %v38, %v47
    %v50 = vsub.f32 %v39, %v48
    %v51 = vmul.f32 %v49, %v49
    %v52 = vmul.f32 %v50, %v50
    %v53 = vsel %vm40, %v51, 0.0
    %54 = vadd.xlane.f32.xlu0 %v53
    %v55 = vpop.xlane.xlu0 %54
    %v56 = vsel %vm40, %v52, 0.0
    %57 = vadd.xlane.f32.xlu0 %v56
    %v58 = vpop.xlane.xlu0 %57
    %v59 = vmul.f32 %v55, 0.03125
    %v60 = vmul.f32 %v58, 0.03125
    %v61 = vadd.f32 %v59, 1e-12
    %v62 = vadd.f32 %v60, 1e-12
    %v63 = vrsqrt.pop %v61
    %v64 = vrsqrt.pop %v62
    %v65 = vld [vmem:[#allocation5] sm:$0x1]
    %v66 = vld [vmem:[#allocation5 + $0x1] sm:$0x1]
    %v67 = vmul.f32 %v49, %v63
    %v68 = vmul.f32 %v50, %v64
    %v69 = vlaneseq
    %v70 = vshrl.u32 %v69, 7
    %v71 = vsub.s32 0, %v70
    %v72 = vrot.slane %v65, %v71
    %v73 = vmul.f32 %v67, %v72
    %v74 = vmul.f32 %v68, %v72
    %v75 = vlaneseq
    %v76 = vshrl.u32 %v75, 7
    %v77 = vsub.s32 0, %v76
    %v78 = vrot.slane %v66, %v77
    %v79 = vadd.f32 %v73, %v78
    %v80 = vadd.f32 %v74, %v78
    %81 = vst.msk [vmem:[#allocation7] sm:$0xff] %vm40, %v79
    %82 = vst.msk [vmem:[#allocation7 + $0x8] sm:$0xff] %vm40, %v80
    // Predicated region
    $region18: #{tpu_custom_call.1} parent=1 // pred_check
      _
    $region19: #{tpu_custom_call.1} parent=1 // pred_check_branch
      %84 = sbr.rel (0) target = $region21
    $region20: #{tpu_custom_call.1} parent=1 // pred_region
      %s86 = ssub.s32 256, 256
      %87 = vsyncadd [#allocation4], %s86
      %s88 = sshll.u32 [#allocation7], 4
      %s89 = int_to_ptr.vmem [resolvable:$true] %s88
      %94 = dma.vmem_to_hbm [thread:$0]  %s89, 256, %s2, [#allocation4], 128, 128, 8
    $region21: #{tpu_custom_call.1} parent=1 // pred_fallthru
      _
    // Predicated region
    $region22: #{tpu_custom_call.1} parent=1 // pred_check
      _
    $region23: #{tpu_custom_call.1} parent=1 // pred_check_branch
      %96 = sbr.rel (0) target = $region25
    $region24: #{tpu_custom_call.1} parent=1 // pred_region
      %97 = dma.done [#allocation4], 256
    $region25: #{tpu_custom_call.1} parent=1 // pred_fallthru
      _
    %98 = vsyncpa [#allocation3], 1
    %99 = vsyncpa [#allocation6], 1
    %100 = vsyncpa [#allocation4], 1

</llo_original>
